<compile_context>
chip_gen: v5e
topology: v5e:2x2
jax: 0.10.0
libtpu: 0.0.40
codegen_flags: <defaults>
</compile_context>

<pallas_src>
import functools

import jax
import jax.numpy as jnp
from jax.experimental import pallas as pl
from jax.experimental.pallas import tpu as pltpu

HIDDEN = 256   # fc1 output width
LANE = 128     # lane-dense padded action width for the fc2 output


# ---------------------------------------------------------------------------
# Kernels
# ---------------------------------------------------------------------------
def _fc_stack(x_ref, w1_ref, b1_ref, w2_ref, b2_ref):
    """relu(x @ w1 + b1) @ w2 + b2 for one batch tile; returns (tm, LANE) f32."""
    # fc1 (4 -> 256): contraction dim of 4 is far too thin for the MXU, so do
    # 4 broadcast FMAs on the VPU with b1 as the accumulator init.  The compute
    # dtype (bf16 on v6e/v7x, f32 on v5e) is carried by the prepared w1/b1.
    x = x_ref[...].astype(w1_ref.dtype)      # (tm, 4)
    w1 = w1_ref[...]                         # (4, 256)
    h = b1_ref[...] + x[:, 0:1] * w1[0:1, :]
    h = h + x[:, 1:2] * w1[1:2, :]
    h = h + x[:, 2:3] * w1[2:3, :]
    h = h + x[:, 3:4] * w1[3:4, :]
    h = jnp.maximum(h, 0.0)                  # ReLU in the fc1 compute dtype

    # fc2 (256 -> 128 padded) on the MXU: bf16 operands, f32 accumulation.
    q = jnp.dot(h.astype(jnp.bfloat16), w2_ref[...],
                preferred_element_type=jnp.float32)
    return q + b2_ref[...]                   # f32 bias add, (tm, LANE)


def dqn_forward_kernel(x_ref, w1_ref, b1_ref, w2_ref, b2_ref, o_ref):
    q = _fc_stack(x_ref, w1_ref, b1_ref, w2_ref, b2_ref)
    o_ref[...] = q.astype(o_ref.dtype)       # lane-dense bf16 full store


def dqn_act_kernel(x_ref, w1_ref, b1_ref, w2_ref, b2_ref, a_ref, *, n_actions):
    # Fused greedy action: avoids writing the padded (tm,128) Q slab to HBM.
    q = _fc_stack(x_ref, w1_ref, b1_ref, w2_ref, b2_ref)          # (tm, LANE) f32
    lane = jax.lax.broadcasted_iota(jnp.int32, q.shape, 1)
    q = jnp.where(lane < n_actions, q, -jnp.inf)  # padded lanes can never win
    qmax = jnp.max(q, axis=-1, keepdims=True)
    act = jnp.min(jnp.where(q == qmax, lane, LANE), axis=-1, keepdims=True)
    a_ref[...] = act.astype(jnp.int32)            # (tm, 1) int32


# ---------------------------------------------------------------------------
# Wrappers
# ---------------------------------------------------------------------------
def _fc1_compute_dtype():
    """bf16 VALU exists on v6e/v7x; v5e/v4 have no bf16 vector arithmetic."""
    try:
        kind = jax.devices()[0].device_kind.lower()
    except Exception:
        return jnp.float32
    if ("v6" in kind) or ("v7" in kind) or ("7x" in kind):
        return jnp.bfloat16
    return jnp.float32


def prepare_params(w1, b1, w2, b2):
    """Pad the action axis to 128 lanes and pre-cast weights.

    Hoisted out of the forward: call ONCE at init / target-network sync, not
    per forward call (on the act() path this padding used to cost more than
    the kernel itself)."""
    n_actions = w2.shape[1]
    fc1_dt = _fc1_compute_dtype()
    w1p = w1.astype(fc1_dt)
    b1p = b1.astype(fc1_dt)
    w2p = jnp.zeros((HIDDEN, LANE), jnp.bfloat16).at[:, :n_actions].set(
        w2.astype(jnp.bfloat16))
    b2p = jnp.zeros((1, LANE), jnp.float32).at[:, :n_actions].set(
        b2.astype(jnp.float32))
    return w1p, b1p, w2p, b2p


def _batch_tiling(B, *, max_tile=2048, two_tiles_from=128):
    """Few, big tiles: 1 tile for tiny act() batches; >=2 tiles (each <=2048
    rows, multiple of 8) for replay batches so v7x can shard them across TCs."""
    b8 = -(-B // 8) * 8
    if b8 < two_tiles_from:
        num_tiles = 1
    else:
        num_tiles = max(2, -(-b8 // max_tile))
    tm = -(-(-(-b8 // num_tiles)) // 8) * 8
    return tm, num_tiles, num_tiles * tm


def _call(kernel, x, params, out_cols, out_dtype):
    w1, b1, w2p, b2p = params
    B = x.shape[0]
    tm, num_tiles, b_pad = _batch_tiling(B)
    if b_pad != B:
        x = jnp.concatenate(
            [x, jnp.zeros((b_pad - B, x.shape[1]), x.dtype)], axis=0)

    flops = 2 * b_pad * 4 * HIDDEN + 2 * b_pad * HIDDEN * LANE
    bytes_accessed = (
        x.size * x.dtype.itemsize
        + w1.size * w1.dtype.itemsize + b1.size * b1.dtype.itemsize
        + w2p.size * w2p.dtype.itemsize + b2p.size * b2p.dtype.itemsize
        + b_pad * out_cols * jnp.dtype(out_dtype).itemsize)

    out = pl.pallas_call(
        kernel,
        out_shape=jax.ShapeDtypeStruct((b_pad, out_cols), out_dtype),
        grid_spec=pltpu.PrefetchScalarGridSpec(
            num_scalar_prefetch=0,
            grid=(num_tiles,),
            in_specs=[
                # x: tiled over the batch axis.
                pl.BlockSpec((tm, 4), lambda i: (i, 0)),
                # Weights/biases: constant block index -> DMA'd once, resident.
                pl.BlockSpec((4, HIDDEN), lambda i: (0, 0)),
                pl.BlockSpec((1, HIDDEN), lambda i: (0, 0)),
                pl.BlockSpec((HIDDEN, LANE), lambda i: (0, 0)),
                pl.BlockSpec((1, LANE), lambda i: (0, 0)),
            ],
            out_specs=pl.BlockSpec((tm, out_cols), lambda i: (i, 0)),
        ),
        compiler_params=pltpu.CompilerParams(
            dimension_semantics=("parallel",)),  # v7x: tiles shard across TCs
        cost_estimate=pl.CostEstimate(flops=int(flops), transcendentals=0,
                                      bytes_accessed=int(bytes_accessed)),
    )(x, w1, b1, w2p, b2p)
    return out, B


def dqn_forward(x, params, n_actions):
    """x: (B, 4) f32; params from prepare_params(). Returns (B, n_actions) f32
    == relu(x @ w1 + b1) @ w2 + b2 (PyTorch Linear with transposed weights)."""
    out, B = _call(dqn_forward_kernel, x, params, LANE, jnp.bfloat16)
    return out[:B, :n_actions].astype(jnp.float32)


def dqn_act_greedy(x, params, n_actions):
    """Greedy (exploit) action: argmax over the real action lanes, fused in-kernel."""
    kern = functools.partial(dqn_act_kernel, n_actions=n_actions)
    out, B = _call(kern, x, params, 1, jnp.int32)
    return out[:B, 0]


def init_params(key, n_actions):
    """Deterministic parameter init matching the shapes from DQN.__init__ (f32,
    PyTorch layout transposed)."""
    k1, k2, k3, k4 = jax.random.split(key, 4)
    w1 = jax.random.uniform(k1, (4, HIDDEN), jnp.float32, minval=-0.5, maxval=0.5)
    b1 = jax.random.uniform(k2, (1, HIDDEN), jnp.float32, minval=-0.5, maxval=0.5)
    w2 = jax.random.uniform(k3, (HIDDEN, n_actions), jnp.float32,
                            minval=-0.0625, maxval=0.0625)
    b2 = jax.random.uniform(k4, (1, n_actions), jnp.float32,
                            minval=-0.0625, maxval=0.0625)
    return w1, b1, w2, b2


if __name__ == "__main__":
    key = jax.random.PRNGKey(0)
    k_x, k_x2, k_p = jax.random.split(key, 3)

    n_actions = 2
    w1, b1, w2, b2 = init_params(k_p, n_actions)
    params = prepare_params(w1, b1, w2, b2)   # hoisted: once per (target-)net update

    def ref_fwd(xx):
        return jnp.maximum(xx @ w1 + b1, 0.0) @ w2 + b2

    # Small CartPole-style act() batch: single tile, grid=(1,).
    x_small = jax.random.normal(k_x, (8, 4), jnp.float32)
    q_small = dqn_forward(x_small, params, n_actions)
    jax.block_until_ready(q_small)
    assert q_small.shape == (8, n_actions)
    assert jnp.allclose(q_small, ref_fwd(x_small), atol=2e-2, rtol=2e-2)

    # Replay-style batch: exercises padding + the 2-tile "parallel" batch grid.
    x_big = jax.random.normal(k_x2, (500, 4), jnp.float32)
    q_big = dqn_forward(x_big, params, n_actions)
    jax.block_until_ready(q_big)
    assert q_big.shape == (500, n_actions)
    assert jnp.allclose(q_big, ref_fwd(x_big), atol=2e-2, rtol=2e-2)

    # Fused greedy-action kernel (act() exploit path).
    a_big = dqn_act_greedy(x_big, params, n_actions)
    jax.block_until_ready(a_big)
    assert a_big.shape == (500,)
    assert bool(jnp.all((a_big >= 0) & (a_big < n_actions)))
    ref_q = ref_fwd(x_big)
    ref_a = jnp.argmax(ref_q, axis=1)
    srt = jnp.sort(ref_q, axis=1)
    clear = (srt[:, -1] - srt[:, -2]) > 5e-2   # ignore near-ties (bf16 rounding)
    assert bool(jnp.all(jnp.where(clear, a_big == ref_a, True)))

    # TODO(synk): act()'s epsilon-greedy branch (python random.random/randint)
    # is host-side control flow; only the greedy argmax path is fused in-kernel.
    print("KERNEL_OK")
</pallas_src>

<mosaic_0001>
module attributes {stable_mosaic.version = 11 : i64} {
  func.func @dqn_forward_kernel(%arg0: i32, %arg1: memref<8x4xf32, #tpu.memory_space<vmem>>, %arg2: memref<4x256xf32, #tpu.memory_space<vmem>>, %arg3: memref<1x256xf32, #tpu.memory_space<vmem>>, %arg4: memref<256x128xbf16, #tpu.memory_space<vmem>>, %arg5: memref<1x128xf32, #tpu.memory_space<vmem>>, %arg6: memref<8x128xbf16, #tpu.memory_space<vmem>>) attributes {dimension_semantics = [#tpu.dimension_semantics<parallel>], iteration_bounds = array<i64: 1>, scalar_prefetch = 0 : i64, scratch_operands = 0 : i64, tpu.core_type = #tpu.core_type<tc>, window_params = [{transform_indices = @transform_0, window_bounds = array<i64: 8, 4>}, {pipeline_mode = #tpu.pipeline_mode<synchronous>, transform_indices = @transform_1, window_bounds = array<i64: 4, 256>}, {pipeline_mode = #tpu.pipeline_mode<synchronous>, transform_indices = @transform_2, window_bounds = array<i64: 1, 256>}, {pipeline_mode = #tpu.pipeline_mode<synchronous>, transform_indices = @transform_3, window_bounds = array<i64: 256, 128>}, {pipeline_mode = #tpu.pipeline_mode<synchronous>, transform_indices = @transform_4, window_bounds = array<i64: 1, 128>}, {transform_indices = @transform_5, window_bounds = array<i64: 8, 128>}]} {
    %c0 = arith.constant 0 : index
    %c0_0 = arith.constant 0 : index
    %0 = vector.load %arg1[%c0, %c0_0] : memref<8x4xf32, #tpu.memory_space<vmem>>, vector<8x4xf32>
    %c0_1 = arith.constant 0 : index
    %c0_2 = arith.constant 0 : index
    %1 = vector.load %arg2[%c0_1, %c0_2] : memref<4x256xf32, #tpu.memory_space<vmem>>, vector<4x256xf32>
    %c0_3 = arith.constant 0 : index
    %c0_4 = arith.constant 0 : index
    %2 = vector.load %arg3[%c0_3, %c0_4] : memref<1x256xf32, #tpu.memory_space<vmem>>, vector<1x256xf32>
    %3 = vector.extract_strided_slice %0 {offsets = [0, 0], sizes = [8, 1], strides = [1, 1]} : vector<8x4xf32> to vector<8x1xf32>
    %4 = vector.extract_strided_slice %1 {offsets = [0, 0], sizes = [1, 256], strides = [1, 1]} : vector<4x256xf32> to vector<1x256xf32>
    %5 = vector.broadcast %3 : vector<8x1xf32> to vector<8x256xf32>
    %6 = vector.broadcast %4 : vector<1x256xf32> to vector<8x256xf32>
    %7 = arith.mulf %5, %6 : vector<8x256xf32>
    %8 = vector.broadcast %2 : vector<1x256xf32> to vector<8x256xf32>
    %9 = arith.addf %8, %7 : vector<8x256xf32>
    %10 = vector.extract_strided_slice %0 {offsets = [0, 1], sizes = [8, 1], strides = [1, 1]} : vector<8x4xf32> to vector<8x1xf32>
    %11 = vector.extract_strided_slice %1 {offsets = [1, 0], sizes = [1, 256], strides = [1, 1]} : vector<4x256xf32> to vector<1x256xf32>
    %12 = vector.broadcast %10 : vector<8x1xf32> to vector<8x256xf32>
    %13 = vector.broadcast %11 : vector<1x256xf32> to vector<8x256xf32>
    %14 = arith.mulf %12, %13 : vector<8x256xf32>
    %15 = arith.addf %9, %14 : vector<8x256xf32>
    %16 = vector.extract_strided_slice %0 {offsets = [0, 2], sizes = [8, 1], strides = [1, 1]} : vector<8x4xf32> to vector<8x1xf32>
    %17 = vector.extract_strided_slice %1 {offsets = [2, 0], sizes = [1, 256], strides = [1, 1]} : vector<4x256xf32> to vector<1x256xf32>
    %18 = vector.broadcast %16 : vector<8x1xf32> to vector<8x256xf32>
    %19 = vector.broadcast %17 : vector<1x256xf32> to vector<8x256xf32>
    %20 = arith.mulf %18, %19 : vector<8x256xf32>
    %21 = arith.addf %15, %20 : vector<8x256xf32>
    %22 = vector.extract_strided_slice %0 {offsets = [0, 3], sizes = [8, 1], strides = [1, 1]} : vector<8x4xf32> to vector<8x1xf32>
    %23 = vector.extract_strided_slice %1 {offsets = [3, 0], sizes = [1, 256], strides = [1, 1]} : vector<4x256xf32> to vector<1x256xf32>
    %24 = vector.broadcast %22 : vector<8x1xf32> to vector<8x256xf32>
    %25 = vector.broadcast %23 : vector<1x256xf32> to vector<8x256xf32>
    %26 = arith.mulf %24, %25 : vector<8x256xf32>
    %27 = arith.addf %21, %26 : vector<8x256xf32>
    %cst = arith.constant 0.000000e+00 : f32
    %28 = vector.broadcast %cst : f32 to vector<8x256xf32>
    %29 = arith.maximumf %27, %28 : vector<8x256xf32>
    %30 = arith.truncf %29 : vector<8x256xf32> to vector<8x256xbf16>
    %c0_5 = arith.constant 0 : index
    %c0_6 = arith.constant 0 : index
    %31 = vector.load %arg4[%c0_5, %c0_6] : memref<256x128xbf16, #tpu.memory_space<vmem>>, vector<256x128xbf16>
    %cst_7 = arith.constant dense<0.000000e+00> : vector<8x128xf32>
    %32 = tpu.matmul %30, %31, %cst_7 {dimension_numbers = #tpu.dot_dimension_numbers<[1], [0], [0], [1], [0, 0, 1, 1], [], []>} : vector<8x256xbf16>, vector<256x128xbf16>, vector<8x128xf32> -> vector<8x128xf32>
    %c0_8 = arith.constant 0 : index
    %c0_9 = arith.constant 0 : index
    %33 = vector.load %arg5[%c0_8, %c0_9] : memref<1x128xf32, #tpu.memory_space<vmem>>, vector<1x128xf32>
    %34 = vector.broadcast %33 : vector<1x128xf32> to vector<8x128xf32>
    %35 = arith.addf %32, %34 : vector<8x128xf32>
    %36 = arith.truncf %35 : vector<8x128xf32> to vector<8x128xbf16>
    %c0_10 = arith.constant 0 : index
    %c0_11 = arith.constant 0 : index
    %37 = vector.load %arg6[%c0_10, %c0_11] : memref<8x128xbf16, #tpu.memory_space<vmem>>, vector<8x128xbf16>
    tpu.vector_store %arg6[%c0_10, %c0_11], %36 {strides = array<i32>} : memref<8x128xbf16, #tpu.memory_space<vmem>>, vector<8x128xbf16>,
    return
  }
  func.func @transform_0(%arg0: i32) -> (i32, i32) {
    %c0_i32 = arith.constant 0 : i32
    %c0_i32_0 = arith.constant 0 : i32
    return %arg0, %c0_i32 : i32, i32
  }
  func.func @transform_1(%arg0: i32) -> (i32, i32) {
    %c0_i32 = arith.constant 0 : i32
    %c0_i32_0 = arith.constant 0 : i32
    %c0_i32_1 = arith.constant 0 : i32
    return %c0_i32, %c0_i32_0 : i32, i32
  }
  func.func @transform_2(%arg0: i32) -> (i32, i32) {
    %c0_i32 = arith.constant 0 : i32
    %c0_i32_0 = arith.constant 0 : i32
    %c0_i32_1 = arith.constant 0 : i32
    return %c0_i32, %c0_i32_0 : i32, i32
  }
  func.func @transform_3(%arg0: i32) -> (i32, i32) {
    %c0_i32 = arith.constant 0 : i32
    %c0_i32_0 = arith.constant 0 : i32
    %c0_i32_1 = arith.constant 0 : i32
    return %c0_i32, %c0_i32_0 : i32, i32
  }
  func.func @transform_4(%arg0: i32) -> (i32, i32) {
    %c0_i32 = arith.constant 0 : i32
    %c0_i32_0 = arith.constant 0 : i32
    %c0_i32_1 = arith.constant 0 : i32
    return %c0_i32, %c0_i32_0 : i32, i32
  }
  func.func @transform_5(%arg0: i32) -> (i32, i32) {
    %c0_i32 = arith.constant 0 : i32
    %c0_i32_0 = arith.constant 0 : i32
    return %arg0, %c0_i32 : i32, i32
  }
}

</mosaic_0001>

<llo_original>
// kernel: tpu_custom_call.1
$region0: #{tpu_custom_call.1}
  #allocation0 [shape = 'u32[]', space=smem, size = 0x4, offset = 0x4, fixed_abs, tag = 'smem constant byte address 0x4 - core index']
  #allocation1 [shape = 'u32[72,128]{1,0:T(1,128)}', space=vmem, size = 0x9000, scoped, tag = 'internal scratch']
  %s0 = inlined_call_operand.vmem [shape: f32[8,4], index: 0, kind: input, shape index: {}]
  %s1 = inlined_call_operand.vmem [shape: f32[4,256], index: 1, kind: input, shape index: {}]
  %s2 = inlined_call_operand.vmem [shape: f32[1,256], index: 2, kind: input, shape index: {}]
  %s3 = inlined_call_operand.hbm [shape: bf16[256,128], index: 3, kind: input, shape index: {}]
  %s4 = inlined_call_operand.vmem [shape: f32[1,128], index: 4, kind: input, shape index: {}]
  %s5 = inlined_call_operand.hbm [shape: bf16[8,128], index: 5, kind: output, shape index: {}]
  %s6 = sld [smem:[#allocation0]]
  $region34: #{tpu_custom_call.1} parent=0
    _
  %s8 = ssub.s32 1, %s6
  %s9 = scalar_select 0, %s8, %s6
  $region1: #{tpu_custom_call.1} parent=0
    #allocation2 [shape = 'u8[65536]{0}', space=vmem, size = 0x10000, scoped, tag = 'input window, operand 3, single buffered']
    #allocation3 [shape = 's32[1]{0}', space=sflag, size = 0x4, scoped, tag = 'scoped memory for tpu_custom_call.1']
    #allocation4 [shape = 's32[1]{0}', space=sflag, size = 0x4, scoped, tag = 'scoped memory for tpu_custom_call.1']
    #allocation5 [shape = 'u8[2048]{0}', space=vmem, size = 0x800, scoped, tag = 'output window, operand 0, single buffered']
    %10 = vsyncpa [#allocation3], 0
    %11 = vsyncpa [#allocation4], 0
    // Predicated region
    $region2: #{tpu_custom_call.1} parent=1 // pred_check
      _
    $region3: #{tpu_custom_call.1} parent=1 // pred_check_branch
      %13 = sbr.rel (0) target = $region5
    $region4: #{tpu_custom_call.1} parent=1 // pred_region
      _
    $region5: #{tpu_custom_call.1} parent=1 // pred_fallthru
      _
    // Predicated region
    $region6: #{tpu_custom_call.1} parent=1 // pred_check
      _
    $region7: #{tpu_custom_call.1} parent=1 // pred_check_branch
      %15 = sbr.rel (0) target = $region9
    $region8: #{tpu_custom_call.1} parent=1 // pred_region
      _
    $region9: #{tpu_custom_call.1} parent=1 // pred_fallthru
      _
    // Predicated region
    $region10: #{tpu_custom_call.1} parent=1 // pred_check
      _
    $region11: #{tpu_custom_call.1} parent=1 // pred_check_branch
      %17 = sbr.rel (0) target = $region13
    $region12: #{tpu_custom_call.1} parent=1 // pred_region
      _
    $region13: #{tpu_custom_call.1} parent=1 // pred_fallthru
      _
    // Predicated region
    $region14: #{tpu_custom_call.1} parent=1 // pred_check
      _
    $region15: #{tpu_custom_call.1} parent=1 // pred_check_branch
      %19 = sbr.rel (0) target = $region17
    $region16: #{tpu_custom_call.1} parent=1 // pred_region
      %21 = vsyncadd [#allocation3], 0
      %s22 = sshll.u32 %s3, 4
      %s23 = int_to_ptr.hbm [resolvable:$true] %s22
      %s24 = sshll.u32 [#allocation2], 4
      %s25 = int_to_ptr.vmem [resolvable:$true] %s24
      %30 = dma.hbm_to_vmem [thread:$0]  %s23, 2048, %s25, [#allocation3], 64, 64, 4
    $region17: #{tpu_custom_call.1} parent=1 // pred_fallthru
      _
    // Predicated region
    $region18: #{tpu_custom_call.1} parent=1 // pred_check
      _
    $region19: #{tpu_custom_call.1} parent=1 // pred_check_branch
      %32 = sbr.rel (0) target = $region21
    $region20: #{tpu_custom_call.1} parent=1 // pred_region
      _
    $region21: #{tpu_custom_call.1} parent=1 // pred_fallthru
      _
    // Predicated region
    $region22: #{tpu_custom_call.1} parent=1 // pred_check
      _
    $region23: #{tpu_custom_call.1} parent=1 // pred_check_branch
      %34 = sbr.rel (0) target = $region25
    $region24: #{tpu_custom_call.1} parent=1 // pred_region
      %36 = dma.done [#allocation3], 2048
    $region25: #{tpu_custom_call.1} parent=1 // pred_fallthru
      _
    %v37 = vld [vmem:[%s0] sm:$0xff]
    %v38 = vld [vmem:[%s1] sm:$0xff]
    %v39 = vld [vmem:[%s2] sm:$0x3]
    %41 = vset.pattern.permute.xlu0 0
    %42 = vperm.xlu0 %41, %v37
    %v43 = vpop.permute.xlu0 %42
    %v46 = vperm.slane %v38, 0
    %v47 = vperm.slane %v38, 4
    %v50 = vperm.slane %v46, 0
    %v51 = vperm.slane %v47, 0
    %v52 = vmul.f32 %v43, %v50
    %v53 = vmul.f32 %v43, %v51
    %v55 = vperm.slane %v39, 0
    %v56 = vperm.slane %v39, 1
    %v59 = vadd.f32 %v55, %v52
    %v60 = vadd.f32 %v56, %v53
    %61 = vset.pattern.permute.xlu0 1
    %62 = vperm.xlu0 %61, %v37
    %v63 = vpop.permute.xlu0 %62
    %v65 = vperm.slane %v38, 1
    %v66 = vperm.slane %v38, 5
    %v69 = vperm.slane %v65, 1
    %v70 = vperm.slane %v66, 1
    %v71 = vmul.f32 %v63, %v69
    %v72 = vmul.f32 %v63, %v70
    %v73 = vadd.f32 %v59, %v71
    %v74 = vadd.f32 %v60, %v72
    %75 = vset.pattern.permute.xlu0 2
    %76 = vperm.xlu0 %75, %v37
    %v77 = vpop.permute.xlu0 %76
    %v79 = vperm.slane %v38, 2
    %v80 = vperm.slane %v38, 6
    %v83 = vperm.slane %v79, 2
    %v84 = vperm.slane %v80, 2
    %v85 = vmul.f32 %v77, %v83
    %v86 = vmul.f32 %v77, %v84
    %v87 = vadd.f32 %v73, %v85
    %v88 = vadd.f32 %v74, %v86
    %89 = vset.pattern.permute.xlu0 3
    %90 = vperm.xlu0 %89, %v37
    %v91 = vpop.permute.xlu0 %90
    %v93 = vperm.slane %v38, 3
    %v94 = vperm.slane %v38, 7
    %v97 = vperm.slane %v93, 3
    %v98 = vperm.slane %v94, 3
    %v99 = vmul.f32 %v91, %v97
    %v100 = vmul.f32 %v91, %v98
    %v101 = vadd.f32 %v87, %v99
    %v102 = vadd.f32 %v88, %v100
    %v103 = vmax.f32 %v101, 0.0
    %v104 = vmax.f32 %v102, 0.0
    %v105 = vpack.c.bf16 %v103, %v103
    %v106 = vpack.c.bf16 %v104, %v104
    %v107 = vld [vmem:[#allocation2] sm:$0xf]
    %v108 = vld [vmem:[#allocation2 + $0x4] sm:$0xf]
    %v109 = vld [vmem:[#allocation2 + $0x8] sm:$0xf]
    %v110 = vld [vmem:[#allocation2 + $0xc] sm:$0xf]
    %v111 = vld [vmem:[#allocation2 + $0x10] sm:$0xf]
    %v112 = vld [vmem:[#allocation2 + $0x14] sm:$0xf]
    %v113 = vld [vmem:[#allocation2 + $0x18] sm:$0xf]
    %v114 = vld [vmem:[#allocation2 + $0x1c] sm:$0xf]
    %v115 = vld [vmem:[#allocation2 + $0x20] sm:$0xf]
    %v116 = vld [vmem:[#allocation2 + $0x24] sm:$0xf]
    %v117 = vld [vmem:[#allocation2 + $0x28] sm:$0xf]
    %v118 = vld [vmem:[#allocation2 + $0x2c] sm:$0xf]
    %v119 = vld [vmem:[#allocation2 + $0x30] sm:$0xf]
    %v120 = vld [vmem:[#allocation2 + $0x34] sm:$0xf]
    %v121 = vld [vmem:[#allocation2 + $0x38] sm:$0xf]
    %v122 = vld [vmem:[#allocation2 + $0x3c] sm:$0xf]
    %v123 = vld [vmem:[#allocation2 + $0x40] sm:$0xf]
    %v124 = vld [vmem:[#allocation2 + $0x44] sm:$0xf]
    %v125 = vld [vmem:[#allocation2 + $0x48] sm:$0xf]
    %v126 = vld [vmem:[#allocation2 + $0x4c] sm:$0xf]
    %v127 = vld [vmem:[#allocation2 + $0x50] sm:$0xf]
    %v128 = vld [vmem:[#allocation2 + $0x54] sm:$0xf]
    %v129 = vld [vmem:[#allocation2 + $0x58] sm:$0xf]
    %v130 = vld [vmem:[#allocation2 + $0x5c] sm:$0xf]
    %v131 = vld [vmem:[#allocation2 + $0x60] sm:$0xf]
    %v132 = vld [vmem:[#allocation2 + $0x64] sm:$0xf]
    %v133 = vld [vmem:[#allocation2 + $0x68] sm:$0xf]
    %v134 = vld [vmem:[#allocation2 + $0x6c] sm:$0xf]
    %v135 = vld [vmem:[#allocation2 + $0x70] sm:$0xf]
    %v136 = vld [vmem:[#allocation2 + $0x74] sm:$0xf]
    %v137 = vld [vmem:[#allocation2 + $0x78] sm:$0xf]
    %v138 = vld [vmem:[#allocation2 + $0x7c] sm:$0xf]
    %v139 = vld [vmem:[%s4] sm:$0x1]
    %v141 = vperm.slane %v139, 0
    %v175 = vunpack.c.l.b16 %v107
    %v176 = vunpack.c.l.b16 %v108
    %v177 = vunpack.c.l.b16 %v109
    %v178 = vunpack.c.l.b16 %v110
    %v179 = vunpack.c.l.b16 %v111
    %v180 = vunpack.c.l.b16 %v112
    %v181 = vunpack.c.l.b16 %v113
    %v182 = vunpack.c.l.b16 %v114
    %v183 = vunpack.c.l.b16 %v115
    %v184 = vunpack.c.l.b16 %v116
    %v185 = vunpack.c.l.b16 %v117
    %v186 = vunpack.c.l.b16 %v118
    %v187 = vunpack.c.l.b16 %v119
    %v188 = vunpack.c.l.b16 %v120
    %v189 = vunpack.c.l.b16 %v121
    %v190 = vunpack.c.l.b16 %v122
    %v191 = vunpack.c.l.b16 %v123
    %v192 = vunpack.c.l.b16 %v124
    %v193 = vunpack.c.l.b16 %v125
    %v194 = vunpack.c.l.b16 %v126
    %v195 = vunpack.c.l.b16 %v127
    %v196 = vunpack.c.l.b16 %v128
    %v197 = vunpack.c.l.b16 %v129
    %v198 = vunpack.c.l.b16 %v130
    %v199 = vunpack.c.l.b16 %v131
    %v200 = vunpack.c.l.b16 %v132
    %v201 = vunpack.c.l.b16 %v133
    %v202 = vunpack.c.l.b16 %v134
    %v203 = vunpack.c.l.b16 %v135
    %v204 = vunpack.c.l.b16 %v136
    %v205 = vunpack.c.l.b16 %v137
    %v206 = vunpack.c.l.b16 %v138
    %v207 = vpack.c.b16 %v176, %v175
    %v208 = vpack.c.b16 %v178, %v177
    %v209 = vpack.c.b16 %v180, %v179
    %v210 = vpack.c.b16 %v182, %v181
    %v211 = vpack.c.b16 %v184, %v183
    %v212 = vpack.c.b16 %v186, %v185
    %v213 = vpack.c.b16 %v188, %v187
    %v214 = vpack.c.b16 %v190, %v189
    %v215 = vpack.c.b16 %v192, %v191
    %v216 = vpack.c.b16 %v194, %v193
    %v217 = vpack.c.b16 %v196, %v195
    %v218 = vpack.c.b16 %v198, %v197
    %v219 = vpack.c.b16 %v200, %v199
    %v220 = vpack.c.b16 %v202, %v201
    %v221 = vpack.c.b16 %v204, %v203
    %v222 = vpack.c.b16 %v206, %v205
    %239 = vmatpush.bf16.msra.mxu0 %v214
    %240 = vmatpush.bf16.msra.mxu0 %v213
    %241 = vmatpush.bf16.msra.mxu0 %v212
    %242 = vmatpush.bf16.msra.mxu0 %v211
    %243 = vmatpush.bf16.msra.mxu0 %v210
    %244 = vmatpush.bf16.msra.mxu0 %v209
    %245 = vmatpush.bf16.msra.mxu0 %v208
    %246 = vmatpush.bf16.msra.mxu0 %v207
    %247 = vmatmul.bf16.gmra.mxu0 %v105
    %v248 = vpop.f32.mrf.mxu0
    %v249 = vadd.f32 %v141, %v248
    %v250 = vpop.f32.mrf.mxu0
    %251 = vdwg.mxu0
    %252 = vmatpush.bf16.msra.mxu0 %v222
    %253 = vmatpush.bf16.msra.mxu0 %v221
    %254 = vmatpush.bf16.msra.mxu0 %v220
    %255 = vmatpush.bf16.msra.mxu0 %v219
    %256 = vmatpush.bf16.msra.mxu0 %v218
    %257 = vmatpush.bf16.msra.mxu0 %v217
    %258 = vmatpush.bf16.msra.mxu0 %v216
    %259 = vmatpush.bf16.msra.mxu0 %v215
    %260 = vmatmul.bf16.gmra.mxu0 %v106
    %v261 = vpop.f32.mrf.mxu0
    %v262 = vadd.f32 %v249, %v261
    %v263 = vpop.f32.mrf.mxu0
    %264 = vdwg.mxu0
    %v265 = vpack.c.bf16 %v262, %v262
    %266 = vst [vmem:[#allocation5] sm:$0xf] %v265
    // Predicated region
    $region26: #{tpu_custom_call.1} parent=1 // pred_check
      _
    $region27: #{tpu_custom_call.1} parent=1 // pred_check_branch
      %268 = sbr.rel (0) target = $region29
    $region28: #{tpu_custom_call.1} parent=1 // pred_region
      %270 = vsyncadd [#allocation4], 0
      %s272 = sshll.u32 [#allocation5], 4
      %s273 = int_to_ptr.vmem [resolvable:$true] %s272
      %s274 = sshll.u32 %s5, 4
      %s275 = int_to_ptr.hbm [resolvable:$true] %s274
      %277 = dma.vmem_to_hbm [thread:$0]  %s273, 64, %s275, [#allocation4]
    $region29: #{tpu_custom_call.1} parent=1 // pred_fallthru
      _
    // Predicated region
    $region30: #{tpu_custom_call.1} parent=1 // pred_check
      _
    $region31: #{tpu_custom_call.1} parent=1 // pred_check_branch
      %279 = sbr.rel (0) target = $region33
    $region32: #{tpu_custom_call.1} parent=1 // pred_region
      %281 = dma.done [#allocation4], 64
    $region33: #{tpu_custom_call.1} parent=1 // pred_fallthru
      _
    %282 = vsyncpa [#allocation3], 1
    %283 = vsyncpa [#allocation4], 1

</llo_original>
